<compile_context>
chip_gen: v7x
topology: tpu7x:2x2x1
jax: 0.10.0
libtpu: 0.0.40
codegen_flags: <defaults>
</compile_context>

<pallas_src>
from typing import List, Optional, Tuple

import jax
import jax.numpy as jnp
from jax.experimental import pallas as pl
from jax.experimental.pallas import tpu as pltpu

ShapeList = List[Tuple[int, ...]]

_LANES = 128
# 4096 rows * 128 lanes * 4 B = 2 MiB per f32 block; in + out + det double
# buffered stays ~12 MiB of VMEM -> fits every generation's scoped default.
_DEFAULT_TILE_ROWS = 4096


# ----------------------------- Pallas kernels ----------------------------- #

def _fwd_kernel(sls_ref, r_ref, seg_ref, inv_scale_ref, shift_ref, p_ref, det_ref):
    """forward map f(r) = p and |det dp/dr| in packed lane-dense layout.

    r/p blocks are (tile_rows, 128): each 128-lane row holds 128//n samples
    laid out [s0d0..s0d(n-1), s1d0..], i.e. the flat (batch, n) buffer viewed
    as rows of 128.  Per-dim params arrive as a (1, 128) tiled row (broadcast
    over sublanes); seg (128, g) is a 0/1 matrix that turns per-lane values
    into per-sample sums on the MXU (idle otherwise).
        p   = shift - log1p(-r) * inv_scale
        det = exp(-(sum_i log(scale_i) + sum_i log1p(-r_i)))
    """
    r = r_ref[...]                                                # (T, 128)
    log_omr = jnp.log1p(-r)                                       # EUP
    p_ref[...] = shift_ref[...] - log_omr * inv_scale_ref[...]    # VPU
    row_sums = jnp.dot(log_omr, seg_ref[...],                     # MXU, (T, g)
                       precision=jax.lax.Precision.HIGHEST,
                       preferred_element_type=jnp.float32)
    det_ref[...] = jnp.exp(-(row_sums + sls_ref[0, 0]))           # 1 exp / sample


def _inv_kernel(sls_ref, p_ref, seg_ref, scale_ref, shift_ref, r_ref, det_ref):
    """inverse map f^{-1}(p) = r and |det dr/dp|, same packed layout.

        z   = -scale * (p - shift)
        r   = -expm1(z)
        det = exp(sum_i z_i + sum_i log(scale_i))
    """
    p = p_ref[...]
    z = -scale_ref[...] * (p - shift_ref[...])
    r_ref[...] = -jnp.expm1(z)
    row_sums = jnp.dot(z, seg_ref[...],
                       precision=jax.lax.Precision.HIGHEST,
                       preferred_element_type=jnp.float32)
    det_ref[...] = jnp.exp(row_sums + sls_ref[0, 0])


# ------------------------------ Host wrapper ------------------------------ #

def _pick_tile_rows(nrows: int, max_rows: int) -> int:
    """Row-tile: sublane multiple, capped for VMEM, >=2 tiles when possible
    so ("parallel",) splits the grid across v7x's two TensorCores."""
    if nrows <= 8:
        return nrows                      # single full block (allowed: == full dim)
    half = -(-((nrows + 1) // 2) // 8) * 8
    return max(8, min(max_rows, half))


def _run_mapping_kernel(kernel, x_bn, param_row, shift_row, seg, sum_log_scale,
                        tile_rows: int = _DEFAULT_TILE_ROWS):
    """Run one of the mapping kernels on (batch, n) data.

    The contiguous (batch, n) array is reshaped (a free bitcast, no HBM copy)
    to (batch*n/128, 128) so the big operands are fully lane-dense.  Returns
    ((batch, n) out, (batch,) det).
    """
    b, n = x_bn.shape
    g = _LANES // n
    x = x_bn.astype(jnp.float32)

    pad_rows = (-b) % g
    if pad_rows:
        # Fallback for batches not divisible by 128//n: costs one extra HBM
        # pass; keep batch % (128 // n_dims) == 0 on the hot path.
        x = jnp.pad(x, ((0, pad_rows), (0, 0)))
    bp = b + pad_rows

    rows = (bp * n) // _LANES
    x2 = x.reshape(rows, _LANES)          # free reshape of a contiguous buffer

    tbr = _pick_tile_rows(rows, tile_rows)
    grid = (pl.cdiv(rows, tbr),)          # ragged tail handled by masked writes

    p2, det2 = pl.pallas_call(
        kernel,
        grid=grid,
        out_shape=(
            jax.ShapeDtypeStruct((rows, _LANES), jnp.float32),
            jax.ShapeDtypeStruct((rows, g), jnp.float32),
        ),
        in_specs=[
            # sum(log(scale)) scalar in SMEM, read once per tile.
            pl.BlockSpec(memory_space=pltpu.MemorySpace.SMEM),
            # data tile, batch lane-dense.
            pl.BlockSpec((tbr, _LANES), lambda i: (i, 0)),
            # constant-index blocks stay VMEM resident (no re-DMA per step).
            pl.BlockSpec((_LANES, g), lambda i: (0, 0)),     # segment-sum matrix
            pl.BlockSpec((1, _LANES), lambda i: (0, 0)),     # per-dim param row
            pl.BlockSpec((1, _LANES), lambda i: (0, 0)),     # shift row
        ],
        out_specs=(
            pl.BlockSpec((tbr, _LANES), lambda i: (i, 0)),
            pl.BlockSpec((tbr, g), lambda i: (i, 0)),
        ),
        compiler_params=pltpu.CompilerParams(
            dimension_semantics=("parallel",),    # shard tiles across TCs (v7x)
            vmem_limit_bytes=32 * 1024 * 1024,    # headroom-safe on v7x 64 MiB
        ),
    )(sum_log_scale, x2, seg, param_row, shift_row)

    out = p2.reshape(bp, n)               # free reshape
    det = det2.reshape(bp)                # free reshape
    if pad_rows:
        out = out[:b]
        det = det[:b]
    return out, det


# -------------------------- Module-like wrappers --------------------------- #

class PhaseSpaceMapping:
    """JAX port of the PyTorch base class (madspace/base.py)."""

    def __init__(self, dims_in: ShapeList, dims_out: ShapeList,
                 dims_c: Optional[ShapeList] = None):
        self.dims_in = dims_in
        self.dims_out = dims_out
        self.dims_c = dims_c

    def forward(self, inputs, condition=None, inverse=False, **kwargs):
        if inverse:
            return self.map_inverse(inputs, condition, **kwargs)
        return self.map(inputs, condition, **kwargs)

    __call__ = forward

    def map(self, inputs, condition=None, **kwargs):
        raise NotImplementedError(
            f"{self.__class__.__name__} does not provide _map(...) method")

    def map_inverse(self, inputs, condition=None, **kwargs):
        raise NotImplementedError(
            f"{self.__class__.__name__} does not provide _map_inverse(...) method")

    def density(self, inputs, condition=None, inverse=False, **kwargs):
        raise NotImplementedError(
            f"{self.__class__.__name__} does not provide _map_inverse(...) method")


class ExpPhaseSpaceMapping(PhaseSpaceMapping):
    """Concrete mapping: r in (0,1)^n  ->  p = shift - log(1-r)/scale.

    Density convention: map() returns |det dp/dr|, map_inverse() |det dr/dp|
    (so det_fwd * det_inv == 1).  Verify against the framework's convention
    before swapping in.
    """

    def __init__(self, n_dims: int, tile_rows: int = _DEFAULT_TILE_ROWS):
        super().__init__(dims_in=[(n_dims,)], dims_out=[(n_dims,)], dims_c=None)
        assert _LANES % n_dims == 0, "packed layout needs 128 % n_dims == 0"
        self.n_dims = n_dims
        self.tile_rows = tile_rows
        g = _LANES // n_dims

        # Deterministic parameter init (synthetic; no checkpoint load).
        scale = 0.5 + 0.1 * jnp.arange(n_dims, dtype=jnp.float32)
        shift = 0.05 * jnp.arange(n_dims, dtype=jnp.float32)

        # Kernel-side constants, hoisted once:
        #  * per-dim params tiled across the 128 lanes (one row, broadcasts
        #    over sublanes inside the kernel),
        #  * 0/1 segment-sum matrix for the MXU reduction,
        #  * sum(log(scale)) as a single SMEM scalar.
        self.scale_row = jnp.tile(scale, g).reshape(1, _LANES)
        self.inv_scale_row = jnp.tile(1.0 / scale, g).reshape(1, _LANES)
        self.shift_row = jnp.tile(shift, g).reshape(1, _LANES)
        lane = jnp.arange(_LANES)
        self.seg = (lane[:, None] // n_dims == jnp.arange(g)[None, :]
                    ).astype(jnp.float32)                       # (128, g)
        self.sum_log_scale = jnp.sum(jnp.log(scale)).reshape(1, 1)

    def map(self, inputs, condition=None, **kwargs):
        (r,) = inputs
        p, det = _run_mapping_kernel(_fwd_kernel, r, self.inv_scale_row,
                                     self.shift_row, self.seg,
                                     self.sum_log_scale, self.tile_rows)
        return (p,), det

    def map_inverse(self, inputs, condition=None, **kwargs):
        (p,) = inputs
        r, det = _run_mapping_kernel(_inv_kernel, p, self.scale_row,
                                     self.shift_row, self.seg,
                                     self.sum_log_scale, self.tile_rows)
        return (r,), det

    def density(self, inputs, condition=None, inverse=False, **kwargs):
        _, det = self.forward(inputs, condition, inverse=inverse, **kwargs)
        return det


# --------------------------------- Driver ---------------------------------- #

if __name__ == "__main__":
    key = jax.random.PRNGKey(0)
    batch, n_dims = 1024, 8
    # Random numbers r in (0, 1), as expected by the forward (r -> p) map.
    r = jax.random.uniform(key, (batch, n_dims), dtype=jnp.float32,
                           minval=1e-3, maxval=1.0 - 1e-3)

    mapping = ExpPhaseSpaceMapping(n_dims)

    # forward: f(r) = p, plus density
    (p,), det_fwd = mapping([r], inverse=False)
    # inverse: f^{-1}(p) = r, plus density
    (r_back,), det_inv = mapping([p], inverse=True)

    jax.block_until_ready((p, det_fwd, r_back, det_inv))

    # Sanity checks (shapes, finiteness, roundtrip, jacobian consistency).
    assert p.shape == (batch, n_dims) and det_fwd.shape == (batch,)
    assert r_back.shape == (batch, n_dims) and det_inv.shape == (batch,)
    assert bool(jnp.all(jnp.isfinite(p))) and bool(jnp.all(jnp.isfinite(det_fwd)))
    assert float(jnp.max(jnp.abs(r_back - r))) < 1e-4
    assert float(jnp.max(jnp.abs(det_fwd * det_inv - 1.0))) < 1e-3

    print("KERNEL_OK")
</pallas_src>

<mosaic_0001>
module attributes {stable_mosaic.version = 11 : i64} {
  func.func @_fwd_kernel(%arg0: i32, %arg1: memref<1x1xf32, #tpu.memory_space<smem>>, %arg2: memref<32x128xf32, #tpu.memory_space<vmem>>, %arg3: memref<128x16xf32, #tpu.memory_space<vmem>>, %arg4: memref<1x128xf32, #tpu.memory_space<vmem>>, %arg5: memref<1x128xf32, #tpu.memory_space<vmem>>, %arg6: memref<32x128xf32, #tpu.memory_space<vmem>>, %arg7: memref<32x16xf32, #tpu.memory_space<vmem>>) attributes {dimension_semantics = [#tpu.dimension_semantics<parallel>], iteration_bounds = array<i64: 2>, scalar_prefetch = 0 : i64, scratch_operands = 0 : i64, tpu.core_type = #tpu.core_type<tc>, window_params = [{transform_indices = @transform_0, window_bounds = array<i64: 1, 1>}, {transform_indices = @transform_1, window_bounds = array<i64: 32, 128>}, {pipeline_mode = #tpu.pipeline_mode<synchronous>, transform_indices = @transform_2, window_bounds = array<i64: 128, 16>}, {pipeline_mode = #tpu.pipeline_mode<synchronous>, transform_indices = @transform_3, window_bounds = array<i64: 1, 128>}, {pipeline_mode = #tpu.pipeline_mode<synchronous>, transform_indices = @transform_4, window_bounds = array<i64: 1, 128>}, {transform_indices = @transform_5, window_bounds = array<i64: 32, 128>}, {transform_indices = @transform_6, window_bounds = array<i64: 32, 16>}]} {
    %c0 = arith.constant 0 : index
    %c0_0 = arith.constant 0 : index
    %0 = vector.load %arg2[%c0, %c0_0] : memref<32x128xf32, #tpu.memory_space<vmem>>, vector<32x128xf32>
    %cst = arith.constant 0.000000e+00 : f32
    %1 = vector.broadcast %cst : f32 to vector<32x128xf32>
    %2 = arith.subf %1, %0 : vector<32x128xf32>
    %3 = math.log1p %2 : vector<32x128xf32>
    %c0_1 = arith.constant 0 : index
    %c0_2 = arith.constant 0 : index
    %4 = vector.load %arg5[%c0_1, %c0_2] : memref<1x128xf32, #tpu.memory_space<vmem>>, vector<1x128xf32>
    %c0_3 = arith.constant 0 : index
    %c0_4 = arith.constant 0 : index
    %5 = vector.load %arg4[%c0_3, %c0_4] : memref<1x128xf32, #tpu.memory_space<vmem>>, vector<1x128xf32>
    %6 = vector.broadcast %5 : vector<1x128xf32> to vector<32x128xf32>
    %7 = arith.mulf %3, %6 : vector<32x128xf32>
    %8 = vector.broadcast %4 : vector<1x128xf32> to vector<32x128xf32>
    %9 = arith.subf %8, %7 : vector<32x128xf32>
    %c0_5 = arith.constant 0 : index
    %c0_6 = arith.constant 0 : index
    %10 = vector.load %arg6[%c0_5, %c0_6] : memref<32x128xf32, #tpu.memory_space<vmem>>, vector<32x128xf32>
    tpu.vector_store %arg6[%c0_5, %c0_6], %9 {strides = array<i32>} : memref<32x128xf32, #tpu.memory_space<vmem>>, vector<32x128xf32>,
    %c0_7 = arith.constant 0 : index
    %c0_8 = arith.constant 0 : index
    %11 = vector.load %arg3[%c0_7, %c0_8] : memref<128x16xf32, #tpu.memory_space<vmem>>, vector<128x16xf32>
    %cst_9 = arith.constant dense<0.000000e+00> : vector<32x16xf32>
    %12 = tpu.matmul %3, %11, %cst_9 {dimension_numbers = #tpu.dot_dimension_numbers<[1], [0], [0], [1], [0, 0, 1, 1], [], []>, precision = #tpu.contract_precision<fp32>} : vector<32x128xf32>, vector<128x16xf32>, vector<32x16xf32> -> vector<32x16xf32>
    %c0_10 = arith.constant 0 : index
    %c0_11 = arith.constant 0 : index
    %13 = memref.load %arg1[%c0_10, %c0_11] : memref<1x1xf32, #tpu.memory_space<smem>>
    %14 = vector.broadcast %13 : f32 to vector<32x16xf32>
    %15 = arith.addf %12, %14 : vector<32x16xf32>
    %cst_12 = arith.constant 0.000000e+00 : f32
    %16 = vector.broadcast %cst_12 : f32 to vector<32x16xf32>
    %17 = arith.subf %16, %15 : vector<32x16xf32>
    %18 = math.exp %17 : vector<32x16xf32>
    %c0_13 = arith.constant 0 : index
    %c0_14 = arith.constant 0 : index
    %19 = vector.load %arg7[%c0_13, %c0_14] : memref<32x16xf32, #tpu.memory_space<vmem>>, vector<32x16xf32>
    tpu.vector_store %arg7[%c0_13, %c0_14], %18 {strides = array<i32>} : memref<32x16xf32, #tpu.memory_space<vmem>>, vector<32x16xf32>,
    return
  }
  func.func @transform_0(%arg0: i32) -> (i32, i32) {
    %c0_i32 = arith.constant 0 : i32
    %c0_i32_0 = arith.constant 0 : i32
    %c0_i32_1 = arith.constant 0 : i32
    return %c0_i32, %c0_i32_0 : i32, i32
  }
  func.func @transform_1(%arg0: i32) -> (i32, i32) {
    %c0_i32 = arith.constant 0 : i32
    %c0_i32_0 = arith.constant 0 : i32
    return %arg0, %c0_i32 : i32, i32
  }
  func.func @transform_2(%arg0: i32) -> (i32, i32) {
    %c0_i32 = arith.constant 0 : i32
    %c0_i32_0 = arith.constant 0 : i32
    %c0_i32_1 = arith.constant 0 : i32
    return %c0_i32, %c0_i32_0 : i32, i32
  }
  func.func @transform_3(%arg0: i32) -> (i32, i32) {
    %c0_i32 = arith.constant 0 : i32
    %c0_i32_0 = arith.constant 0 : i32
    %c0_i32_1 = arith.constant 0 : i32
    return %c0_i32, %c0_i32_0 : i32, i32
  }
  func.func @transform_4(%arg0: i32) -> (i32, i32) {
    %c0_i32 = arith.constant 0 : i32
    %c0_i32_0 = arith.constant 0 : i32
    %c0_i32_1 = arith.constant 0 : i32
    return %c0_i32, %c0_i32_0 : i32, i32
  }
  func.func @transform_5(%arg0: i32) -> (i32, i32) {
    %c0_i32 = arith.constant 0 : i32
    %c0_i32_0 = arith.constant 0 : i32
    return %arg0, %c0_i32 : i32, i32
  }
  func.func @transform_6(%arg0: i32) -> (i32, i32) {
    %c0_i32 = arith.constant 0 : i32
    %c0_i32_0 = arith.constant 0 : i32
    return %arg0, %c0_i32 : i32, i32
  }
}

</mosaic_0001>

<llo_original>
// kernel: tpu_custom_call.1
$region0: #{tpu_custom_call.1}
  #allocation0 [shape = 'u32[]', space=smem, size = 0x4, offset = 0x4, fixed_abs, tag = 'smem constant byte address 0x4 - core index']
  #allocation1 [shape = 'u32[144,128]{1,0:T(1,128)}', space=vmem, size = 0x12000, scoped, tag = 'internal scratch']
  #allocation2 [shape = 'f32[1,1]{1,0:T(1,128)S(6)}', space=smem, size = 0x200, scoped, tag = 'scoped memory for tpu_custom_call.1']
  %s0 = inlined_call_operand.<no memory space> [shape: f32[1,1], index: 0, kind: input, shape index: {}]
  %s1 = inlined_call_operand.vmem [shape: f32[64,128], index: 1, kind: input, shape index: {}]
  %s2 = inlined_call_operand.vmem [shape: f32[128,16], index: 2, kind: input, shape index: {}]
  %s3 = inlined_call_operand.vmem [shape: f32[1,128], index: 3, kind: input, shape index: {}]
  %s4 = inlined_call_operand.vmem [shape: f32[1,128], index: 4, kind: input, shape index: {}]
  %s5 = inlined_call_operand.hbm [shape: f32[64,128], index: 5, kind: output, shape index: {0}]
  %s6 = inlined_call_operand.vmem [shape: f32[64,16], index: 6, kind: output, shape index: {1}]
  %7 = xla_tuple %s5, %s6
  %s8 = sld [smem:[#allocation0]]
  $region61: #{tpu_custom_call.1} parent=0
    _
  %s10 = ssub.s32 1, %s8
  %s11 = scalar_select 0, %s10, %s8
  %12 = sst [smem:[#allocation2]] %s0
  $region1: #{tpu_custom_call.1} parent=0
    #allocation3 [shape = 'u8[32768]{0}', space=vmem, size = 0x8000, scoped, tag = 'output window, operand 0']
    #allocation4 [shape = 's32[2]{0}', space=sflag, size = 0x8, scoped, tag = 'scoped memory for tpu_custom_call.1']
    %13 = vsyncpa [#allocation4], 0
    %s14 = scalar_lea.sflag [#allocation4], 1
    %15 = vsyncpa %s14, 0
    loop: start=0, step=1, limit=4
    $region2: #{tpu_custom_call.1} parent=1 // loop_pre_header
      _
    $region3: #{tpu_custom_call.1} parent=1 // loop_header
      %s17 = sphi 0, %s21
      %p18 = scmp.ge.s32.totalorder %s17, 4
      %s25 = sphi 0, %s25
      %s27 = sphi 0, %s25
      %s28 = sphi 0, %s27
      %s42 = sphi 0, %s28
      %s48 = sphi 0, %s50
      %s51 = sphi 0, %s48
      %s52 = sphi 0, %s51
      %s68 = sphi 0, %s52
      %s72 = sphi 0, %s72
      %s74 = sphi 0, %s72
      %s75 = sphi 0, %s74
      %s89 = sphi 0, %s75
      %s93 = sphi 0, %s93
      %s95 = sphi 0, %s93
      %s96 = sphi 0, %s95
      %s110 = sphi 0, %s96
      %s114 = sphi 0, %s114
      %s116 = sphi 0, %s114
      %s117 = sphi 0, %s116
      %s131 = sphi 0, %s117
      %s137 = sphi 0, %s139
      %s140 = sphi 0, %s137
      %s141 = sphi 0, %s140
      %s157 = sphi 0, %s141
      %s163 = sphi 0, %s165
      %s166 = sphi 0, %s163
      %s167 = sphi 0, %s166
      %s183 = sphi 0, %s167
    $region4: #{tpu_custom_call.1} parent=1 // loop_header_branch
      %20 = sbr.rel (%p18) target = $region8
    $region5: #{tpu_custom_call.1} parent=1 // loop_body
      %s22 = ssub.s32 %s17, 1
      %s23 = ssub.s32 %s17, 2
      %s24 = sadd.s32 %s17, 1
      %s26 = sadd.s32 %s25, 1
      %p29 = scmp.eq.s32.totalorder %s17, 1
      %p30 = scmp.ne.s32.totalorder %s25, %s27
      %p31 = scmp.eq.s32.totalorder %s17, 0
      %p32 = por %p30, %p31
      %p33 = scmp.ne.s32.totalorder %s25, %s27
      %p34 = scmp.eq.s32.totalorder %s22, 1
      %p35 = por %p33, %p34
      %p36 = scmp.ne.s32.totalorder %s27, %s28
      %p37 = scmp.eq.s32.totalorder %s22, 0
      %p38 = por %p36, %p37
      %p39 = scmp.ne.s32.totalorder %s27, %s28
      %p40 = scmp.eq.s32.totalorder %s23, 1
      %p41 = por %p39, %p40
      %p43 = scmp.ne.s32.totalorder %s28, %s42
      %p44 = scmp.eq.s32.totalorder %s23, 0
      %p45 = por %p43, %p44
      %s46 = ssub.s32 %s17, %s24
      %p47 = scmp.eq.s32.totalorder %s46, 0
      %s49 = sadd.s32 %s48, 1
      %s50 = scalar_select %p47, %s48, %s49
      %p53 = pneg %p47
      %p54 = scmp.eq.s32.totalorder %s17, 1
      %p55 = por %p53, %p54
      %p56 = scmp.ne.s32.totalorder %s48, %s51
      %p57 = scmp.eq.s32.totalorder %s17, 0
      %p58 = por %p56, %p57
      %p59 = scmp.ne.s32.totalorder %s48, %s51
      %p60 = scmp.eq.s32.totalorder %s22, 1
      %p61 = por %p59, %p60
      %p62 = scmp.ne.s32.totalorder %s51, %s52
      %p63 = scmp.eq.s32.totalorder %s22, 0
      %p64 = por %p62, %p63
      %p65 = scmp.ne.s32.totalorder %s51, %s52
      %p66 = scmp.eq.s32.totalorder %s23, 1
      %p67 = por %p65, %p66
      %p69 = scmp.ne.s32.totalorder %s52, %s68
      %p70 = scmp.eq.s32.totalorder %s23, 0
      %p71 = por %p69, %p70
      %s73 = sadd.s32 %s72, 1
      %p76 = scmp.eq.s32.totalorder %s17, 1
      %p77 = scmp.ne.s32.totalorder %s72, %s74
      %p78 = scmp.eq.s32.totalorder %s17, 0
      %p79 = por %p77, %p78
      %p80 = scmp.ne.s32.totalorder %s72, %s74
      %p81 = scmp.eq.s32.totalorder %s22, 1
      %p82 = por %p80, %p81
      %p83 = scmp.ne.s32.totalorder %s74, %s75
      %p84 = scmp.eq.s32.totalorder %s22, 0
      %p85 = por %p83, %p84
      %p86 = scmp.ne.s32.totalorder %s74, %s75
      %p87 = scmp.eq.s32.totalorder %s23, 1
      %p88 = por %p86, %p87
      %p90 = scmp.ne.s32.totalorder %s75, %s89
      %p91 = scmp.eq.s32.totalorder %s23, 0
      %p92 = por %p90, %p91
      %s94 = sadd.s32 %s93, 1
      %p97 = scmp.eq.s32.totalorder %s17, 1
      %p98 = scmp.ne.s32.totalorder %s93, %s95
      %p99 = scmp.eq.s32.totalorder %s17, 0
      %p100 = por %p98, %p99
      %p101 = scmp.ne.s32.totalorder %s93, %s95
      %p102 = scmp.eq.s32.totalorder %s22, 1
      %p103 = por %p101, %p102
      %p104 = scmp.ne.s32.totalorder %s95, %s96
      %p105 = scmp.eq.s32.totalorder %s22, 0
      %p106 = por %p104, %p105
      %p107 = scmp.ne.s32.totalorder %s95, %s96
      %p108 = scmp.eq.s32.totalorder %s23, 1
      %p109 = por %p107, %p108
      %p111 = scmp.ne.s32.totalorder %s96, %s110
      %p112 = scmp.eq.s32.totalorder %s23, 0
      %p113 = por %p111, %p112
      %s115 = sadd.s32 %s114, 1
      %p118 = scmp.eq.s32.totalorder %s17, 1
      %p119 = scmp.ne.s32.totalorder %s114, %s116
      %p120 = scmp.eq.s32.totalorder %s17, 0
      %p121 = por %p119, %p120
      %p122 = scmp.ne.s32.totalorder %s114, %s116
      %p123 = scmp.eq.s32.totalorder %s22, 1
      %p124 = por %p122, %p123
      %p125 = scmp.ne.s32.totalorder %s116, %s117
      %p126 = scmp.eq.s32.totalorder %s22, 0
      %p127 = por %p125, %p126
      %p128 = scmp.ne.s32.totalorder %s116, %s117
      %p129 = scmp.eq.s32.totalorder %s23, 1
      %p130 = por %p128, %p129
      %p132 = scmp.ne.s32.totalorder %s117, %s131
      %p133 = scmp.eq.s32.totalorder %s23, 0
      %p134 = por %p132, %p133
      %s135 = ssub.s32 %s17, %s24
      %p136 = scmp.eq.s32.totalorder %s135, 0
      %s138 = sadd.s32 %s137, 1
      %s139 = scalar_select %p136, %s137, %s138
      %p142 = pneg %p136
      %p143 = scmp.eq.s32.totalorder %s17, 1
      %p144 = por %p142, %p143
      %p145 = scmp.ne.s32.totalorder %s137, %s140
      %p146 = scmp.eq.s32.totalorder %s17, 0
      %p147 = por %p145, %p146
      %p148 = scmp.ne.s32.totalorder %s137, %s140
      %p149 = scmp.eq.s32.totalorder %s22, 1
      %p150 = por %p148, %p149
      %p151 = scmp.ne.s32.totalorder %s140, %s141
      %p152 = scmp.eq.s32.totalorder %s22, 0
      %p153 = por %p151, %p152
      %p154 = scmp.ne.s32.totalorder %s140, %s141
      %p155 = scmp.eq.s32.totalorder %s23, 1
      %p156 = por %p154, %p155
      %p158 = scmp.ne.s32.totalorder %s141, %s157
      %p159 = scmp.eq.s32.totalorder %s23, 0
      %p160 = por %p158, %p159
      %s161 = ssub.s32 %s17, %s24
      %p162 = scmp.eq.s32.totalorder %s161, 0
      %s164 = sadd.s32 %s163, 1
      %s165 = scalar_select %p162, %s163, %s164
      %p168 = pneg %p162
      %p169 = scmp.eq.s32.totalorder %s17, 1
      %p170 = por %p168, %p169
      %p171 = scmp.ne.s32.totalorder %s163, %s166
      %p172 = scmp.eq.s32.totalorder %s17, 0
      %p173 = por %p171, %p172
      %p174 = scmp.ne.s32.totalorder %s163, %s166
      %p175 = scmp.eq.s32.totalorder %s22, 1
      %p176 = por %p174, %p175
      %p177 = scmp.ne.s32.totalorder %s166, %s167
      %p178 = scmp.eq.s32.totalorder %s22, 0
      %p179 = por %p177, %p178
      %p180 = scmp.ne.s32.totalorder %s166, %s167
      %p181 = scmp.eq.s32.totalorder %s23, 1
      %p182 = por %p180, %p181
      %p184 = scmp.ne.s32.totalorder %s167, %s183
      %p185 = scmp.eq.s32.totalorder %s23, 0
      %p186 = por %p184, %p185
      %p187 = scmp.le.s32.totalorder 1, %s17
      %p188 = scmp.lt.s32.totalorder %s17, 3
      %p189 = pnand %p187, %p188
      %p190 = pneg %p189
      // Predicated region
      $region9: #{tpu_custom_call.1} parent=5 // pred_check
        _
      $region10: #{tpu_custom_call.1} parent=5 // pred_check_branch
        %192 = sbr.rel (%p189) target = $region12
      $region11: #{tpu_custom_call.1} parent=5 // pred_region
        %s193 = ssub.s32 %s17, 1
        // Predicated region
        $region13: #{tpu_custom_call.1} parent=11 // pred_check
          %p194 = pneg %p38
        $region14: #{tpu_custom_call.1} parent=11 // pred_check_branch
          %196 = sbr.rel (%p194) target = $region16
        $region15: #{tpu_custom_call.1} parent=11 // pred_region
          _
        $region16: #{tpu_custom_call.1} parent=11 // pred_fallthru
          _
        // Predicated region
        $region17: #{tpu_custom_call.1} parent=11 // pred_check
          %p197 = pneg %p85
        $region18: #{tpu_custom_call.1} parent=11 // pred_check_branch
          %199 = sbr.rel (%p197) target = $region20
        $region19: #{tpu_custom_call.1} parent=11 // pred_region
          _
        $region20: #{tpu_custom_call.1} parent=11 // pred_fallthru
          _
        // Predicated region
        $region21: #{tpu_custom_call.1} parent=11 // pred_check
          %p200 = pneg %p106
        $region22: #{tpu_custom_call.1} parent=11 // pred_check_branch
          %202 = sbr.rel (%p200) target = $region24
        $region23: #{tpu_custom_call.1} parent=11 // pred_region
          _
        $region24: #{tpu_custom_call.1} parent=11 // pred_fallthru
          _
        // Predicated region
        $region25: #{tpu_custom_call.1} parent=11 // pred_check
          %p203 = pneg %p127
        $region26: #{tpu_custom_call.1} parent=11 // pred_check_branch
          %205 = sbr.rel (%p203) target = $region28
        $region27: #{tpu_custom_call.1} parent=11 // pred_region
          _
        $region28: #{tpu_custom_call.1} parent=11 // pred_fallthru
          _
      $region12: #{tpu_custom_call.1} parent=5 // pred_fallthru
        _
      %p206 = scmp.lt.s32.totalorder %s17, 2
      // Predicated region
      $region29: #{tpu_custom_call.1} parent=5 // pred_check
        %p207 = pneg %p206
      $region30: #{tpu_custom_call.1} parent=5 // pred_check_branch
        %209 = sbr.rel (%p207) target = $region32
      $region31: #{tpu_custom_call.1} parent=5 // pred_region
        // Predicated region
        $region33: #{tpu_custom_call.1} parent=31 // pred_check
          %p210 = pneg %p58
        $region34: #{tpu_custom_call.1} parent=31 // pred_check_branch
          %212 = sbr.rel (%p210) target = $region36
        $region35: #{tpu_custom_call.1} parent=31 // pred_region
          %s213 = smul.u32 4, %s17
          %p214 = scmp.lt.s32.totalorder %s213, 7
          %s215 = scalar_select %p214, %s213, 7
          %s216 = smul.addr %s215, 8
          %s217 = scalar_lea.vmem %s1, %s216
          %s218 = smul.u32 4, %s17
        $region36: #{tpu_custom_call.1} parent=31 // pred_fallthru
          _
      $region32: #{tpu_custom_call.1} parent=5 // pred_fallthru
        _
      %p219 = scmp.le.s32.totalorder 1, %s17
      %p220 = scmp.lt.s32.totalorder %s17, 3
      %p221 = pnand %p219, %p220
      %p222 = pneg %p221
      // Predicated region
      $region37: #{tpu_custom_call.1} parent=5 // pred_check
        _
      $region38: #{tpu_custom_call.1} parent=5 // pred_check_branch
        %224 = sbr.rel (%p221) target = $region40
      $region39: #{tpu_custom_call.1} parent=5 // pred_region
        %s225 = ssub.s32 %s17, 1
        %p226 = pneg %p38
        %p227 = pneg %p35
        %s228 = smul.u32 4, %s22
        %p229 = scmp.lt.s32.totalorder %s228, 7
        %s230 = scalar_select %p229, %s228, 7
        %s231 = smul.addr %s230, 8
        %s232 = scalar_lea.vmem %s1, %s231
        %p233 = pneg %p64
        %p234 = pneg %p61
        %p235 = pneg %p85
        %p236 = pneg %p82
        %p237 = pneg %p106
        %p238 = pneg %p103
        %p239 = pneg %p127
        %p240 = pneg %p124
        %p241 = pneg %p153
        %p242 = pneg %p150
        %s243 = sand.u32 %s140, 1
        %s244 = scalar_lea.sflag [#allocation4], %s243
        %s245 = sand.u32 %s140, 1
        %s246 = smul.addr %s245, 32
        %s247 = scalar_lea.vmem [#allocation3], %s246
        %p248 = pneg %p179
        %p249 = pneg %p176
        %s250 = smul.u32 4, %s22
        %p251 = scmp.lt.s32.totalorder %s250, 7
        %s252 = scalar_select %p251, %s250, 7
        %s253 = smul.addr %s252, 8
        %s254 = scalar_lea.vmem %s6, %s253
        %s255 = smul.u32 4, %s22
        %p256 = scmp.lt.s32.totalorder %s255, 7
        %s257 = scalar_select %p256, %s255, 7
        %s258 = smul.addr %s257, 8
        %s259 = scalar_lea.vmem %s1, %s258
        %s260 = smul.u32 4, %s22
        %s261 = smul.u32 4, %s22
        %s262 = smul.u32 4, %s22
        %p263 = scmp.lt.s32.totalorder %s262, 7
        %s264 = scalar_select %p263, %s262, 7
        %s265 = smul.addr %s264, 8
        %s266 = scalar_lea.vmem %s6, %s265
        %s267 = smul.u32 4, %s22
        %v268 = vld [vmem:[%s259] sm:$0xff]
        %v269 = vld [vmem:[%s259 + $0x8] sm:$0xff]
        %v270 = vld [vmem:[%s259 + $0x10] sm:$0xff]
        %v271 = vld [vmem:[%s259 + $0x18] sm:$0xff]
        %v272 = vsub.f32 0.0, %v268
        %v273 = vsub.f32 0.0, %v269
        %v274 = vsub.f32 0.0, %v270
        %v275 = vsub.f32 0.0, %v271
        %v276 = vadd.f32 %v272, 1.0
        %v277 = vlog2.pop %v276
        %v278 = vmul.f32 %v277, 0.6931472
        %v279 = vmul.f32 -0.5, %v272
        %v280 = vadd.f32 %v279, 1.0
        %v281 = vmul.f32 %v280, %v272
        %v282 = vand.u32 2147483647, %v272
        %vm283 = vcmp.lt.f32.partialorder %v282, 0.0004427343
        %v284 = vsel %vm283, %v281, %v278
        %v285 = vadd.f32 %v273, 1.0
        %v286 = vlog2.pop %v285
        %v287 = vmul.f32 %v286, 0.6931472
        %v288 = vmul.f32 -0.5, %v273
        %v289 = vadd.f32 %v288, 1.0
        %v290 = vmul.f32 %v289, %v273
        %v291 = vand.u32 2147483647, %v273
        %vm292 = vcmp.lt.f32.partialorder %v291, 0.0004427343
        %v293 = vsel %vm292, %v290, %v287
        %v294 = vadd.f32 %v274, 1.0
        %v295 = vlog2.pop %v294
        %v296 = vmul.f32 %v295, 0.6931472
        %v297 = vmul.f32 -0.5, %v274
        %v298 = vadd.f32 %v297, 1.0
        %v299 = vmul.f32 %v298, %v274
        %v300 = vand.u32 2147483647, %v274
        %vm301 = vcmp.lt.f32.partialorder %v300, 0.0004427343
        %v302 = vsel %vm301, %v299, %v296
        %v303 = vadd.f32 %v275, 1.0
        %v304 = vlog2.pop %v303
        %v305 = vmul.f32 %v304, 0.6931472
        %v306 = vmul.f32 -0.5, %v275
        %v307 = vadd.f32 %v306, 1.0
        %v308 = vmul.f32 %v307, %v275
        %v309 = vand.u32 2147483647, %v275
        %vm310 = vcmp.lt.f32.partialorder %v309, 0.0004427343
        %v311 = vsel %vm310, %v308, %v305
        %v312 = vld [vmem:[%s4] sm:$0x1]
        %v313 = vld [vmem:[%s3] sm:$0x1]
        %v315 = vlaneseq
        %v316 = vshrl.u32 %v315, 7
        %v317 = vsub.s32 0, %v316
        %v318 = vrot.slane %v313, %v317
        %v320 = vmul.f32 %v284, %v318
        %v321 = vmul.f32 %v293, %v318
        %v322 = vmul.f32 %v302, %v318
        %v323 = vmul.f32 %v311, %v318
        %v325 = vlaneseq
        %v326 = vshrl.u32 %v325, 7
        %v327 = vsub.s32 0, %v326
        %v328 = vrot.slane %v312, %v327
        %v330 = vsub.f32 %v328, %v320
        %v331 = vsub.f32 %v328, %v321
        %v332 = vsub.f32 %v328, %v322
        %v333 = vsub.f32 %v328, %v323
        %334 = vst [vmem:[%s247] sm:$0xff] %v330
        %335 = vst [vmem:[%s247 + $0x8] sm:$0xff] %v331
        %336 = vst [vmem:[%s247 + $0x10] sm:$0xff] %v332
        %337 = vst [vmem:[%s247 + $0x18] sm:$0xff] %v333
        %v338 = vld [vmem:[%s2] sm:$0xff]
        %v339 = vld [vmem:[%s2 + $0x8] sm:$0xff]
        %v340 = vld [vmem:[%s2 + $0x10] sm:$0xff]
        %v341 = vld [vmem:[%s2 + $0x18] sm:$0xff]
        %v342 = vld [vmem:[%s2 + $0x20] sm:$0xff]
        %v343 = vld [vmem:[%s2 + $0x28] sm:$0xff]
        %v344 = vld [vmem:[%s2 + $0x30] sm:$0xff]
        %v345 = vld [vmem:[%s2 + $0x38] sm:$0xff]
        %v346 = vld [vmem:[%s2 + $0x40] sm:$0xff]
        %v347 = vld [vmem:[%s2 + $0x48] sm:$0xff]
        %v348 = vld [vmem:[%s2 + $0x50] sm:$0xff]
        %v349 = vld [vmem:[%s2 + $0x58] sm:$0xff]
        %v350 = vld [vmem:[%s2 + $0x60] sm:$0xff]
        %v351 = vld [vmem:[%s2 + $0x68] sm:$0xff]
        %v352 = vld [vmem:[%s2 + $0x70] sm:$0xff]
        %v353 = vld [vmem:[%s2 + $0x78] sm:$0xff]
        %s354 = sld [smem:[#allocation2]]
        %v355 = vstv %s354
        %356 = vmatprep.subr.mxu0 0.0
        %v357 = vand.u32 %v338, 4294901760
        %358 = vmatpush1.msra.mxu0 %v357
        %359 = vmatprep.subr.mxu0 0.0
        %v360 = vand.u32 %v339, 4294901760
        %361 = vmatpush1.msra.mxu0 %v360
        %362 = vmatprep.subr.mxu0 0.0
        %v363 = vand.u32 %v340, 4294901760
        %364 = vmatpush1.msra.mxu0 %v363
        %365 = vmatprep.subr.mxu0 0.0
        %v366 = vand.u32 %v341, 4294901760
        %367 = vmatpush1.msra.mxu0 %v366
        %368 = vmatprep.subr.mxu0 0.0
        %v369 = vand.u32 %v342, 4294901760
        %370 = vmatpush1.msra.mxu0 %v369
        %371 = vmatprep.subr.mxu0 0.0
        %v372 = vand.u32 %v343, 4294901760
        %373 = vmatpush1.msra.mxu0 %v372
        %374 = vmatprep.subr.mxu0 0.0
        %v375 = vand.u32 %v344, 4294901760
        %376 = vmatpush1.msra.mxu0 %v375
        %377 = vmatprep.subr.mxu0 0.0
        %v378 = vand.u32 %v345, 4294901760
        %379 = vmatpush1.msra.mxu0 %v378
        %380 = vmatprep.subr.mxu0 0.0
        %v381 = vand.u32 %v346, 4294901760
        %382 = vmatpush1.msra.mxu0 %v381
        %383 = vmatprep.subr.mxu0 0.0
        %v384 = vand.u32 %v347, 4294901760
        %385 = vmatpush1.msra.mxu0 %v384
        %386 = vmatprep.subr.mxu0 0.0
        %v387 = vand.u32 %v348, 4294901760
        %388 = vmatpush1.msra.mxu0 %v387
        %389 = vmatprep.subr.mxu0 0.0
        %v390 = vand.u32 %v349, 4294901760
        %391 = vmatpush1.msra.mxu0 %v390
        %392 = vmatprep.subr.mxu0 0.0
        %v393 = vand.u32 %v350, 4294901760
        %394 = vmatpush1.msra.mxu0 %v393
        %395 = vmatprep.subr.mxu0 0.0
        %v396 = vand.u32 %v351, 4294901760
        %397 = vmatpush1.msra.mxu0 %v396
        %398 = vmatprep.subr.mxu0 0.0
        %v399 = vand.u32 %v352, 4294901760
        %400 = vmatpush1.msra.mxu0 %v399
        %401 = vmatprep.subr.mxu0 0.0
        %v402 = vand.u32 %v353, 4294901760
        %403 = vmatpush1.msra.mxu0 %v402
        %404 = vmatprep.subr.mxu0 0.0
        %405 = vmatpush1.msra.mxu0 0.0
        %406 = vmatprep.subr.mxu0 0.0
        %407 = vmatpush1.msra.mxu0 0.0
        %408 = vmatprep.subr.mxu0 0.0
        %409 = vmatpush1.msra.mxu0 0.0
        %410 = vmatprep.subr.mxu0 0.0
        %411 = vmatpush1.msra.mxu0 0.0
        %412 = vmatprep.subr.mxu0 0.0
        %413 = vmatpush1.msra.mxu0 0.0
        %414 = vmatprep.subr.mxu0 0.0
        %415 = vmatpush1.msra.mxu0 0.0
        %416 = vmatprep.subr.mxu0 0.0
        %417 = vmatpush1.msra.mxu0 0.0
        %418 = vmatprep.subr.mxu0 0.0
        %419 = vmatpush1.msra.mxu0 0.0
        %420 = vmatprep.subr.mxu0 0.0
        %421 = vmatpush1.msra.mxu0 0.0
        %422 = vmatprep.subr.mxu0 0.0
        %423 = vmatpush1.msra.mxu0 0.0
        %424 = vmatprep.subr.mxu0 0.0
        %425 = vmatpush1.msra.mxu0 0.0
        %426 = vmatprep.subr.mxu0 0.0
        %427 = vmatpush1.msra.mxu0 0.0
        %428 = vmatprep.subr.mxu0 0.0
        %429 = vmatpush1.msra.mxu0 0.0
        %430 = vmatprep.subr.mxu0 0.0
        %431 = vmatpush1.msra.mxu0 0.0
        %432 = vmatprep.subr.mxu0 0.0
        %433 = vmatpush1.msra.mxu0 0.0
        %434 = vmatprep.subr.mxu0 0.0
        %435 = vmatpush1.msra.mxu0 0.0
        %436 = vmatprep.mubr.f32.mxu0 0.0
        %v437 = vand.u32 %v284, 4294901760
        %v438 = vsub.f32 %v284, %v437
        %v439 = vand.u32 %v438, 4294901760
        %v440 = vsub.f32 %v438, %v439
        %v441 = vand.u32 %v440, 4294901760
        %442 = vmatmul.mubr.f32.gmra.mrb[0].mxu0 %v441
        %v443 = vpop.f32.mrb[0].mxu0
        %v444 = vadd.f32 %v355, %v443
        %v445 = vpop.f32.mrb[0].mxu0
        %446 = vmatprep.mubr.f32.mxu0 0.0
        %v447 = vand.u32 %v293, 4294901760
        %v448 = vsub.f32 %v293, %v447
        %v449 = vand.u32 %v448, 4294901760
        %v450 = vsub.f32 %v448, %v449
        %v451 = vand.u32 %v450, 4294901760
        %452 = vmatmul.mubr.f32.gmra.mrb[0].mxu0 %v451
        %v453 = vpop.f32.mrb[0].mxu0
        %v454 = vadd.f32 %v355, %v453
        %v455 = vpop.f32.mrb[0].mxu0
        %456 = vmatprep.mubr.f32.mxu0 0.0
        %v457 = vand.u32 %v302, 4294901760
        %v458 = vsub.f32 %v302, %v457
        %v459 = vand.u32 %v458, 4294901760
        %v460 = vsub.f32 %v458, %v459
        %v461 = vand.u32 %v460, 4294901760
        %462 = vmatmul.mubr.f32.gmra.mrb[0].mxu0 %v461
        %v463 = vpop.f32.mrb[0].mxu0
        %v464 = vadd.f32 %v355, %v463
        %v465 = vpop.f32.mrb[0].mxu0
        %466 = vmatprep.mubr.f32.mxu0 0.0
        %v467 = vand.u32 %v311, 4294901760
        %v468 = vsub.f32 %v311, %v467
        %v469 = vand.u32 %v468, 4294901760
        %v470 = vsub.f32 %v468, %v469
        %v471 = vand.u32 %v470, 4294901760
        %472 = vmatmul.mubr.f32.gmra.mrb[0].mxu0 %v471
        %v473 = vpop.f32.mrb[0].mxu0
        %v474 = vadd.f32 %v355, %v473
        %v475 = vpop.f32.mrb[0].mxu0
        %476 = vdwg.mxu0
        %477 = vmatprep.subr.mxu0 0.0
        %v478 = vand.u32 %v338, 4294901760
        %v479 = vsub.f32 %v338, %v478
        %v480 = vand.u32 %v479, 4294901760
        %v481 = vsub.f32 %v479, %v480
        %v482 = vand.u32 %v481, 4294901760
        %483 = vmatpush1.msra.mxu0 %v482
        %484 = vmatprep.subr.mxu0 0.0
        %v485 = vand.u32 %v339, 4294901760
        %v486 = vsub.f32 %v339, %v485
        %v487 = vand.u32 %v486, 4294901760
        %v488 = vsub.f32 %v486, %v487
        %v489 = vand.u32 %v488, 4294901760
        %490 = vmatpush1.msra.mxu0 %v489
        %491 = vmatprep.subr.mxu0 0.0
        %v492 = vand.u32 %v340, 4294901760
        %v493 = vsub.f32 %v340, %v492
        %v494 = vand.u32 %v493, 4294901760
        %v495 = vsub.f32 %v493, %v494
        %v496 = vand.u32 %v495, 4294901760
        %497 = vmatpush1.msra.mxu0 %v496
        %498 = vmatprep.subr.mxu0 0.0
        %v499 = vand.u32 %v341, 4294901760
        %v500 = vsub.f32 %v341, %v499
        %v501 = vand.u32 %v500, 4294901760
        %v502 = vsub.f32 %v500, %v501
        %v503 = vand.u32 %v502, 4294901760
        %504 = vmatpush1.msra.mxu0 %v503
        %505 = vmatprep.subr.mxu0 0.0
        %v506 = vand.u32 %v342, 4294901760
        %v507 = vsub.f32 %v342, %v506
        %v508 = vand.u32 %v507, 4294901760
        %v509 = vsub.f32 %v507, %v508
        %v510 = vand.u32 %v509, 4294901760
        %511 = vmatpush1.msra.mxu0 %v510
        %512 = vmatprep.subr.mxu0 0.0
        %v513 = vand.u32 %v343, 4294901760
        %v514 = vsub.f32 %v343, %v513
        %v515 = vand.u32 %v514, 4294901760
        %v516 = vsub.f32 %v514, %v515
        %v517 = vand.u32 %v516, 4294901760
        %518 = vmatpush1.msra.mxu0 %v517
        %519 = vmatprep.subr.mxu0 0.0
        %v520 = vand.u32 %v344, 4294901760
        %v521 = vsub.f32 %v344, %v520
        %v522 = vand.u32 %v521, 4294901760
        %v523 = vsub.f32 %v521, %v522
        %v524 = vand.u32 %v523, 4294901760
        %525 = vmatpush1.msra.mxu0 %v524
        %526 = vmatprep.subr.mxu0 0.0
        %v527 = vand.u32 %v345, 4294901760
        %v528 = vsub.f32 %v345, %v527
        %v529 = vand.u32 %v528, 4294901760
        %v530 = vsub.f32 %v528, %v529
        %v531 = vand.u32 %v530, 4294901760
        %532 = vmatpush1.msra.mxu0 %v531
        %533 = vmatprep.subr.mxu0 0.0
        %v534 = vand.u32 %v346, 4294901760
        %v535 = vsub.f32 %v346, %v534
        %v536 = vand.u32 %v535, 4294901760
        %v537 = vsub.f32 %v535, %v536
        %v538 = vand.u32 %v537, 4294901760
        %539 = vmatpush1.msra.mxu0 %v538
        %540 = vmatprep.subr.mxu0 0.0
        %v541 = vand.u32 %v347, 4294901760
        %v542 = vsub.f32 %v347, %v541
        %v543 = vand.u32 %v542, 4294901760
        %v544 = vsub.f32 %v542, %v543
        %v545 = vand.u32 %v544, 4294901760
        %546 = vmatpush1.msra.mxu0 %v545
        %547 = vmatprep.subr.mxu0 0.0
        %v548 = vand.u32 %v348, 4294901760
        %v549 = vsub.f32 %v348, %v548
        %v550 = vand.u32 %v549, 4294901760
        %v551 = vsub.f32 %v549, %v550
        %v552 = vand.u32 %v551, 4294901760
        %553 = vmatpush1.msra.mxu0 %v552
        %554 = vmatprep.subr.mxu0 0.0
        %v555 = vand.u32 %v349, 4294901760
        %v556 = vsub.f32 %v349, %v555
        %v557 = vand.u32 %v556, 4294901760
        %v558 = vsub.f32 %v556, %v557
        %v559 = vand.u32 %v558, 4294901760
        %560 = vmatpush1.msra.mxu0 %v559
        %561 = vmatprep.subr.mxu0 0.0
        %v562 = vand.u32 %v350, 4294901760
        %v563 = vsub.f32 %v350, %v562
        %v564 = vand.u32 %v563, 4294901760
        %v565 = vsub.f32 %v563, %v564
        %v566 = vand.u32 %v565, 4294901760
        %567 = vmatpush1.msra.mxu0 %v566
        %568 = vmatprep.subr.mxu0 0.0
        %v569 = vand.u32 %v351, 4294901760
        %v570 = vsub.f32 %v351, %v569
        %v571 = vand.u32 %v570, 4294901760
        %v572 = vsub.f32 %v570, %v571
        %v573 = vand.u32 %v572, 4294901760
        %574 = vmatpush1.msra.mxu0 %v573
        %575 = vmatprep.subr.mxu0 0.0
        %v576 = vand.u32 %v352, 4294901760
        %v577 = vsub.f32 %v352, %v576
        %v578 = vand.u32 %v577, 4294901760
        %v579 = vsub.f32 %v577, %v578
        %v580 = vand.u32 %v579, 4294901760
        %581 = vmatpush1.msra.mxu0 %v580
        %582 = vmatprep.subr.mxu0 0.0
        %v583 = vand.u32 %v353, 4294901760
        %v584 = vsub.f32 %v353, %v583
        %v585 = vand.u32 %v584, 4294901760
        %v586 = vsub.f32 %v584, %v585
        %v587 = vand.u32 %v586, 4294901760
        %588 = vmatpush1.msra.mxu0 %v587
        %589 = vmatprep.subr.mxu0 0.0
        %590 = vmatpush1.msra.mxu0 0.0
        %591 = vmatprep.subr.mxu0 0.0
        %592 = vmatpush1.msra.mxu0 0.0
        %593 = vmatprep.subr.mxu0 0.0
        %594 = vmatpush1.msra.mxu0 0.0
        %595 = vmatprep.subr.mxu0 0.0
        %596 = vmatpush1.msra.mxu0 0.0
        %597 = vmatprep.subr.mxu0 0.0
        %598 = vmatpush1.msra.mxu0 0.0
        %599 = vmatprep.subr.mxu0 0.0
        %600 = vmatpush1.msra.mxu0 0.0
        %601 = vmatprep.subr.mxu0 0.0
        %602 = vmatpush1.msra.mxu0 0.0
        %603 = vmatprep.subr.mxu0 0.0
        %604 = vmatpush1.msra.mxu0 0.0
        %605 = vmatprep.subr.mxu0 0.0
        %606 = vmatpush1.msra.mxu0 0.0
        %607 = vmatprep.subr.mxu0 0.0
        %608 = vmatpush1.msra.mxu0 0.0
        %609 = vmatprep.subr.mxu0 0.0
        %610 = vmatpush1.msra.mxu0 0.0
        %611 = vmatprep.subr.mxu0 0.0
        %612 = vmatpush1.msra.mxu0 0.0
        %613 = vmatprep.subr.mxu0 0.0
        %614 = vmatpush1.msra.mxu0 0.0
        %615 = vmatprep.subr.mxu0 0.0
        %616 = vmatpush1.msra.mxu0 0.0
        %617 = vmatprep.subr.mxu0 0.0
        %618 = vmatpush1.msra.mxu0 0.0
        %619 = vmatprep.subr.mxu0 0.0
        %620 = vmatpush1.msra.mxu0 0.0
        %621 = vmatprep.mubr.f32.mxu0 0.0
        %v622 = vand.u32 %v284, 4294901760
        %623 = vmatmul.mubr.f32.gmra.mrb[0].mxu0 %v622
        %v624 = vpop.f32.mrb[0].mxu0
        %v625 = vadd.f32 %v444, %v624
        %v626 = vpop.f32.mrb[0].mxu0
        %627 = vmatprep.mubr.f32.mxu0 0.0
        %v628 = vand.u32 %v293, 4294901760
        %629 = vmatmul.mubr.f32.gmra.mrb[0].mxu0 %v628
        %v630 = vpop.f32.mrb[0].mxu0
        %v631 = vadd.f32 %v454, %v630
        %v632 = vpop.f32.mrb[0].mxu0
        %633 = vmatprep.mubr.f32.mxu0 0.0
        %v634 = vand.u32 %v302, 4294901760
        %635 = vmatmul.mubr.f32.gmra.mrb[0].mxu0 %v634
        %v636 = vpop.f32.mrb[0].mxu0
        %v637 = vadd.f32 %v464, %v636
        %v638 = vpop.f32.mrb[0].mxu0
        %639 = vmatprep.mubr.f32.mxu0 0.0
        %v640 = vand.u32 %v311, 4294901760
        %641 = vmatmul.mubr.f32.gmra.mrb[0].mxu0 %v640
        %v642 = vpop.f32.mrb[0].mxu0
        %v643 = vadd.f32 %v474, %v642
        %v644 = vpop.f32.mrb[0].mxu0
        %645 = vdwg.mxu0
        %646 = vmatprep.subr.mxu0 0.0
        %v647 = vand.u32 %v338, 4294901760
        %v648 = vsub.f32 %v338, %v647
        %649 = vmatpush1.msra.mxu0 %v648
        %650 = vmatprep.subr.mxu0 0.0
        %v651 = vand.u32 %v339, 4294901760
        %v652 = vsub.f32 %v339, %v651
        %653 = vmatpush1.msra.mxu0 %v652
        %654 = vmatprep.subr.mxu0 0.0
        %v655 = vand.u32 %v340, 4294901760
        %v656 = vsub.f32 %v340, %v655
        %657 = vmatpush1.msra.mxu0 %v656
        %658 = vmatprep.subr.mxu0 0.0
        %v659 = vand.u32 %v341, 4294901760
        %v660 = vsub.f32 %v341, %v659
        %661 = vmatpush1.msra.mxu0 %v660
        %662 = vmatprep.subr.mxu0 0.0
        %v663 = vand.u32 %v342, 4294901760
        %v664 = vsub.f32 %v342, %v663
        %665 = vmatpush1.msra.mxu0 %v664
        %666 = vmatprep.subr.mxu0 0.0
        %v667 = vand.u32 %v343, 4294901760
        %v668 = vsub.f32 %v343, %v667
        %669 = vmatpush1.msra.mxu0 %v668
        %670 = vmatprep.subr.mxu0 0.0
        %v671 = vand.u32 %v344, 4294901760
        %v672 = vsub.f32 %v344, %v671
        %673 = vmatpush1.msra.mxu0 %v672
        %674 = vmatprep.subr.mxu0 0.0
        %v675 = vand.u32 %v345, 4294901760
        %v676 = vsub.f32 %v345, %v675
        %677 = vmatpush1.msra.mxu0 %v676
        %678 = vmatprep.subr.mxu0 0.0
        %v679 = vand.u32 %v346, 4294901760
        %v680 = vsub.f32 %v346, %v679
        %681 = vmatpush1.msra.mxu0 %v680
        %682 = vmatprep.subr.mxu0 0.0
        %v683 = vand.u32 %v347, 4294901760
        %v684 = vsub.f32 %v347, %v683
        %685 = vmatpush1.msra.mxu0 %v684
        %686 = vmatprep.subr.mxu0 0.0
        %v687 = vand.u32 %v348, 4294901760
        %v688 = vsub.f32 %v348, %v687
        %689 = vmatpush1.msra.mxu0 %v688
        %690 = vmatprep.subr.mxu0 0.0
        %v691 = vand.u32 %v349, 4294901760
        %v692 = vsub.f32 %v349, %v691
        %693 = vmatpush1.msra.mxu0 %v692
        %694 = vmatprep.subr.mxu0 0.0
        %v695 = vand.u32 %v350, 4294901760
        %v696 = vsub.f32 %v350, %v695
        %697 = vmatpush1.msra.mxu0 %v696
        %698 = vmatprep.subr.mxu0 0.0
        %v699 = vand.u32 %v351, 4294901760
        %v700 = vsub.f32 %v351, %v699
        %701 = vmatpush1.msra.mxu0 %v700
        %702 = vmatprep.subr.mxu0 0.0
        %v703 = vand.u32 %v352, 4294901760
        %v704 = vsub.f32 %v352, %v703
        %705 = vmatpush1.msra.mxu0 %v704
        %706 = vmatprep.subr.mxu0 0.0
        %v707 = vand.u32 %v353, 4294901760
        %v708 = vsub.f32 %v353, %v707
        %709 = vmatpush1.msra.mxu0 %v708
        %710 = vmatprep.subr.mxu0 0.0
        %711 = vmatpush1.msra.mxu0 0.0
        %712 = vmatprep.subr.mxu0 0.0
        %713 = vmatpush1.msra.mxu0 0.0
        %714 = vmatprep.subr.mxu0 0.0
        %715 = vmatpush1.msra.mxu0 0.0
        %716 = vmatprep.subr.mxu0 0.0
        %717 = vmatpush1.msra.mxu0 0.0
        %718 = vmatprep.subr.mxu0 0.0
        %719 = vmatpush1.msra.mxu0 0.0
        %720 = vmatprep.subr.mxu0 0.0
        %721 = vmatpush1.msra.mxu0 0.0
        %722 = vmatprep.subr.mxu0 0.0
        %723 = vmatpush1.msra.mxu0 0.0
        %724 = vmatprep.subr.mxu0 0.0
        %725 = vmatpush1.msra.mxu0 0.0
        %726 = vmatprep.subr.mxu0 0.0
        %727 = vmatpush1.msra.mxu0 0.0
        %728 = vmatprep.subr.mxu0 0.0
        %729 = vmatpush1.msra.mxu0 0.0
        %730 = vmatprep.subr.mxu0 0.0
        %731 = vmatpush1.msra.mxu0 0.0
        %732 = vmatprep.subr.mxu0 0.0
        %733 = vmatpush1.msra.mxu0 0.0
        %734 = vmatprep.subr.mxu0 0.0
        %735 = vmatpush1.msra.mxu0 0.0
        %736 = vmatprep.subr.mxu0 0.0
        %737 = vmatpush1.msra.mxu0 0.0
        %738 = vmatprep.subr.mxu0 0.0
        %739 = vmatpush1.msra.mxu0 0.0
        %740 = vmatprep.subr.mxu0 0.0
        %741 = vmatpush1.msra.mxu0 0.0
        %742 = vmatprep.mubr.f32.mxu0 0.0
        %v743 = vand.u32 %v284, 4294901760
        %v744 = vsub.f32 %v284, %v743
        %745 = vmatmul.mubr.f32.gmra.mrb[0].mxu0 %v744
        %v746 = vpop.f32.mrb[0].mxu0
        %v747 = vadd.f32 %v625, %v746
        %v748 = vpop.f32.mrb[0].mxu0
        %749 = vmatprep.mubr.f32.mxu0 0.0
        %v750 = vand.u32 %v293, 4294901760
        %v751 = vsub.f32 %v293, %v750
        %752 = vmatmul.mubr.f32.gmra.mrb[0].mxu0 %v751
        %v753 = vpop.f32.mrb[0].mxu0
        %v754 = vadd.f32 %v631, %v753
        %v755 = vpop.f32.mrb[0].mxu0
        %756 = vmatprep.mubr.f32.mxu0 0.0
        %v757 = vand.u32 %v302, 4294901760
        %v758 = vsub.f32 %v302, %v757
        %759 = vmatmul.mubr.f32.gmra.mrb[0].mxu0 %v758
        %v760 = vpop.f32.mrb[0].mxu0
        %v761 = vadd.f32 %v637, %v760
        %v762 = vpop.f32.mrb[0].mxu0
        %763 = vmatprep.mubr.f32.mxu0 0.0
        %v764 = vand.u32 %v311, 4294901760
        %v765 = vsub.f32 %v311, %v764
        %766 = vmatmul.mubr.f32.gmra.mrb[0].mxu0 %v765
        %v767 = vpop.f32.mrb[0].mxu0
        %v768 = vadd.f32 %v643, %v767
        %v769 = vpop.f32.mrb[0].mxu0
        %770 = vdwg.mxu0
        %771 = vmatprep.subr.mxu0 0.0
        %v772 = vand.u32 %v338, 4294901760
        %773 = vmatpush1.msra.mxu0 %v772
        %774 = vmatprep.subr.mxu0 0.0
        %v775 = vand.u32 %v339, 4294901760
        %776 = vmatpush1.msra.mxu0 %v775
        %777 = vmatprep.subr.mxu0 0.0
        %v778 = vand.u32 %v340, 4294901760
        %779 = vmatpush1.msra.mxu0 %v778
        %780 = vmatprep.subr.mxu0 0.0
        %v781 = vand.u32 %v341, 4294901760
        %782 = vmatpush1.msra.mxu0 %v781
        %783 = vmatprep.subr.mxu0 0.0
        %v784 = vand.u32 %v342, 4294901760
        %785 = vmatpush1.msra.mxu0 %v784
        %786 = vmatprep.subr.mxu0 0.0
        %v787 = vand.u32 %v343, 4294901760
        %788 = vmatpush1.msra.mxu0 %v787
        %789 = vmatprep.subr.mxu0 0.0
        %v790 = vand.u32 %v344, 4294901760
        %791 = vmatpush1.msra.mxu0 %v790
        %792 = vmatprep.subr.mxu0 0.0
        %v793 = vand.u32 %v345, 4294901760
        %794 = vmatpush1.msra.mxu0 %v793
        %795 = vmatprep.subr.mxu0 0.0
        %v796 = vand.u32 %v346, 4294901760
        %797 = vmatpush1.msra.mxu0 %v796
        %798 = vmatprep.subr.mxu0 0.0
        %v799 = vand.u32 %v347, 4294901760
        %800 = vmatpush1.msra.mxu0 %v799
        %801 = vmatprep.subr.mxu0 0.0
        %v802 = vand.u32 %v348, 4294901760
        %803 = vmatpush1.msra.mxu0 %v802
        %804 = vmatprep.subr.mxu0 0.0
        %v805 = vand.u32 %v349, 4294901760
        %806 = vmatpush1.msra.mxu0 %v805
        %807 = vmatprep.subr.mxu0 0.0
        %v808 = vand.u32 %v350, 4294901760
        %809 = vmatpush1.msra.mxu0 %v808
        %810 = vmatprep.subr.mxu0 0.0
        %v811 = vand.u32 %v351, 4294901760
        %812 = vmatpush1.msra.mxu0 %v811
        %813 = vmatprep.subr.mxu0 0.0
        %v814 = vand.u32 %v352, 4294901760
        %815 = vmatpush1.msra.mxu0 %v814
        %816 = vmatprep.subr.mxu0 0.0
        %v817 = vand.u32 %v353, 4294901760
        %818 = vmatpush1.msra.mxu0 %v817
        %819 = vmatprep.subr.mxu0 0.0
        %820 = vmatpush1.msra.mxu0 0.0
        %821 = vmatprep.subr.mxu0 0.0
        %822 = vmatpush1.msra.mxu0 0.0
        %823 = vmatprep.subr.mxu0 0.0
        %824 = vmatpush1.msra.mxu0 0.0
        %825 = vmatprep.subr.mxu0 0.0
        %826 = vmatpush1.msra.mxu0 0.0
        %827 = vmatprep.subr.mxu0 0.0
        %828 = vmatpush1.msra.mxu0 0.0
        %829 = vmatprep.subr.mxu0 0.0
        %830 = vmatpush1.msra.mxu0 0.0
        %831 = vmatprep.subr.mxu0 0.0
        %832 = vmatpush1.msra.mxu0 0.0
        %833 = vmatprep.subr.mxu0 0.0
        %834 = vmatpush1.msra.mxu0 0.0
        %835 = vmatprep.subr.mxu0 0.0
        %836 = vmatpush1.msra.mxu0 0.0
        %837 = vmatprep.subr.mxu0 0.0
        %838 = vmatpush1.msra.mxu0 0.0
        %839 = vmatprep.subr.mxu0 0.0
        %840 = vmatpush1.msra.mxu0 0.0
        %841 = vmatprep.subr.mxu0 0.0
        %842 = vmatpush1.msra.mxu0 0.0
        %843 = vmatprep.subr.mxu0 0.0
        %844 = vmatpush1.msra.mxu0 0.0
        %845 = vmatprep.subr.mxu0 0.0
        %846 = vmatpush1.msra.mxu0 0.0
        %847 = vmatprep.subr.mxu0 0.0
        %848 = vmatpush1.msra.mxu0 0.0
        %849 = vmatprep.subr.mxu0 0.0
        %850 = vmatpush1.msra.mxu0 0.0
        %851 = vmatprep.mubr.f32.mxu0 0.0
        %v852 = vand.u32 %v284, 4294901760
        %v853 = vsub.f32 %v284, %v852
        %v854 = vand.u32 %v853, 4294901760
        %855 = vmatmul.mubr.f32.gmra.mrb[0].mxu0 %v854
        %v856 = vpop.f32.mrb[0].mxu0
        %v857 = vadd.f32 %v747, %v856
        %v858 = vpop.f32.mrb[0].mxu0
        %859 = vmatprep.mubr.f32.mxu0 0.0
        %v860 = vand.u32 %v293, 4294901760
        %v861 = vsub.f32 %v293, %v860
        %v862 = vand.u32 %v861, 4294901760
        %863 = vmatmul.mubr.f32.gmra.mrb[0].mxu0 %v862
        %v864 = vpop.f32.mrb[0].mxu0
        %v865 = vadd.f32 %v754, %v864
        %v866 = vpop.f32.mrb[0].mxu0
        %867 = vmatprep.mubr.f32.mxu0 0.0
        %v868 = vand.u32 %v302, 4294901760
        %v869 = vsub.f32 %v302, %v868
        %v870 = vand.u32 %v869, 4294901760
        %871 = vmatmul.mubr.f32.gmra.mrb[0].mxu0 %v870
        %v872 = vpop.f32.mrb[0].mxu0
        %v873 = vadd.f32 %v761, %v872
        %v874 = vpop.f32.mrb[0].mxu0
        %875 = vmatprep.mubr.f32.mxu0 0.0
        %v876 = vand.u32 %v311, 4294901760
        %v877 = vsub.f32 %v311, %v876
        %v878 = vand.u32 %v877, 4294901760
        %879 = vmatmul.mubr.f32.gmra.mrb[0].mxu0 %v878
        %v880 = vpop.f32.mrb[0].mxu0
        %v881 = vadd.f32 %v768, %v880
        %v882 = vpop.f32.mrb[0].mxu0
        %883 = vdwg.mxu0
        %884 = vmatprep.subr.mxu0 0.0
        %v885 = vand.u32 %v338, 4294901760
        %v886 = vsub.f32 %v338, %v885
        %v887 = vand.u32 %v886, 4294901760
        %888 = vmatpush1.msra.mxu0 %v887
        %889 = vmatprep.subr.mxu0 0.0
        %v890 = vand.u32 %v339, 4294901760
        %v891 = vsub.f32 %v339, %v890
        %v892 = vand.u32 %v891, 4294901760
        %893 = vmatpush1.msra.mxu0 %v892
        %894 = vmatprep.subr.mxu0 0.0
        %v895 = vand.u32 %v340, 4294901760
        %v896 = vsub.f32 %v340, %v895
        %v897 = vand.u32 %v896, 4294901760
        %898 = vmatpush1.msra.mxu0 %v897
        %899 = vmatprep.subr.mxu0 0.0
        %v900 = vand.u32 %v341, 4294901760
        %v901 = vsub.f32 %v341, %v900
        %v902 = vand.u32 %v901, 4294901760
        %903 = vmatpush1.msra.mxu0 %v902
        %904 = vmatprep.subr.mxu0 0.0
        %v905 = vand.u32 %v342, 4294901760
        %v906 = vsub.f32 %v342, %v905
        %v907 = vand.u32 %v906, 4294901760
        %908 = vmatpush1.msra.mxu0 %v907
        %909 = vmatprep.subr.mxu0 0.0
        %v910 = vand.u32 %v343, 4294901760
        %v911 = vsub.f32 %v343, %v910
        %v912 = vand.u32 %v911, 4294901760
        %913 = vmatpush1.msra.mxu0 %v912
        %914 = vmatprep.subr.mxu0 0.0
        %v915 = vand.u32 %v344, 4294901760
        %v916 = vsub.f32 %v344, %v915
        %v917 = vand.u32 %v916, 4294901760
        %918 = vmatpush1.msra.mxu0 %v917
        %919 = vmatprep.subr.mxu0 0.0
        %v920 = vand.u32 %v345, 4294901760
        %v921 = vsub.f32 %v345, %v920
        %v922 = vand.u32 %v921, 4294901760
        %923 = vmatpush1.msra.mxu0 %v922
        %924 = vmatprep.subr.mxu0 0.0
        %v925 = vand.u32 %v346, 4294901760
        %v926 = vsub.f32 %v346, %v925
        %v927 = vand.u32 %v926, 4294901760
        %928 = vmatpush1.msra.mxu0 %v927
        %929 = vmatprep.subr.mxu0 0.0
        %v930 = vand.u32 %v347, 4294901760
        %v931 = vsub.f32 %v347, %v930
        %v932 = vand.u32 %v931, 4294901760
        %933 = vmatpush1.msra.mxu0 %v932
        %934 = vmatprep.subr.mxu0 0.0
        %v935 = vand.u32 %v348, 4294901760
        %v936 = vsub.f32 %v348, %v935
        %v937 = vand.u32 %v936, 4294901760
        %938 = vmatpush1.msra.mxu0 %v937
        %939 = vmatprep.subr.mxu0 0.0
        %v940 = vand.u32 %v349, 4294901760
        %v941 = vsub.f32 %v349, %v940
        %v942 = vand.u32 %v941, 4294901760
        %943 = vmatpush1.msra.mxu0 %v942
        %944 = vmatprep.subr.mxu0 0.0
        %v945 = vand.u32 %v350, 4294901760
        %v946 = vsub.f32 %v350, %v945
        %v947 = vand.u32 %v946, 4294901760
        %948 = vmatpush1.msra.mxu0 %v947
        %949 = vmatprep.subr.mxu0 0.0
        %v950 = vand.u32 %v351, 4294901760
        %v951 = vsub.f32 %v351, %v950
        %v952 = vand.u32 %v951, 4294901760
        %953 = vmatpush1.msra.mxu0 %v952
        %954 = vmatprep.subr.mxu0 0.0
        %v955 = vand.u32 %v352, 4294901760
        %v956 = vsub.f32 %v352, %v955
        %v957 = vand.u32 %v956, 4294901760
        %958 = vmatpush1.msra.mxu0 %v957
        %959 = vmatprep.subr.mxu0 0.0
        %v960 = vand.u32 %v353, 4294901760
        %v961 = vsub.f32 %v353, %v960
        %v962 = vand.u32 %v961, 4294901760
        %963 = vmatpush1.msra.mxu0 %v962
        %964 = vmatprep.subr.mxu0 0.0
        %965 = vmatpush1.msra.mxu0 0.0
        %966 = vmatprep.subr.mxu0 0.0
        %967 = vmatpush1.msra.mxu0 0.0
        %968 = vmatprep.subr.mxu0 0.0
        %969 = vmatpush1.msra.mxu0 0.0
        %970 = vmatprep.subr.mxu0 0.0
        %971 = vmatpush1.msra.mxu0 0.0
        %972 = vmatprep.subr.mxu0 0.0
        %973 = vmatpush1.msra.mxu0 0.0
        %974 = vmatprep.subr.mxu0 0.0
        %975 = vmatpush1.msra.mxu0 0.0
        %976 = vmatprep.subr.mxu0 0.0
        %977 = vmatpush1.msra.mxu0 0.0
        %978 = vmatprep.subr.mxu0 0.0
        %979 = vmatpush1.msra.mxu0 0.0
        %980 = vmatprep.subr.mxu0 0.0
        %981 = vmatpush1.msra.mxu0 0.0
        %982 = vmatprep.subr.mxu0 0.0
        %983 = vmatpush1.msra.mxu0 0.0
        %984 = vmatprep.subr.mxu0 0.0
        %985 = vmatpush1.msra.mxu0 0.0
        %986 = vmatprep.subr.mxu0 0.0
        %987 = vmatpush1.msra.mxu0 0.0
        %988 = vmatprep.subr.mxu0 0.0
        %989 = vmatpush1.msra.mxu0 0.0
        %990 = vmatprep.subr.mxu0 0.0
        %991 = vmatpush1.msra.mxu0 0.0
        %992 = vmatprep.subr.mxu0 0.0
        %993 = vmatpush1.msra.mxu0 0.0
        %994 = vmatprep.subr.mxu0 0.0
        %995 = vmatpush1.msra.mxu0 0.0
        %996 = vmatprep.mubr.f32.mxu0 0.0
        %v997 = vand.u32 %v284, 4294901760
        %998 = vmatmul.mubr.f32.gmra.mrb[0].mxu0 %v997
        %v999 = vpop.f32.mrb[0].mxu0
        %v1000 = vadd.f32 %v857, %v999
        %v1001 = vpop.f32.mrb[0].mxu0
        %1002 = vmatprep.mubr.f32.mxu0 0.0
        %v1003 = vand.u32 %v293, 4294901760
        %1004 = vmatmul.mubr.f32.gmra.mrb[0].mxu0 %v1003
        %v1005 = vpop.f32.mrb[0].mxu0
        %v1006 = vadd.f32 %v865, %v1005
        %v1007 = vpop.f32.mrb[0].mxu0
        %1008 = vmatprep.mubr.f32.mxu0 0.0
        %v1009 = vand.u32 %v302, 4294901760
        %1010 = vmatmul.mubr.f32.gmra.mrb[0].mxu0 %v1009
        %v1011 = vpop.f32.mrb[0].mxu0
        %v1012 = vadd.f32 %v873, %v1011
        %v1013 = vpop.f32.mrb[0].mxu0
        %1014 = vmatprep.mubr.f32.mxu0 0.0
        %v1015 = vand.u32 %v311, 4294901760
        %1016 = vmatmul.mubr.f32.gmra.mrb[0].mxu0 %v1015
        %v1017 = vpop.f32.mrb[0].mxu0
        %v1018 = vadd.f32 %v881, %v1017
        %v1019 = vpop.f32.mrb[0].mxu0
        %1020 = vdwg.mxu0
        %1021 = vmatprep.subr.mxu0 0.0
        %v1022 = vand.u32 %v338, 4294901760
        %1023 = vmatpush1.msra.mxu0 %v1022
        %1024 = vmatprep.subr.mxu0 0.0
        %v1025 = vand.u32 %v339, 4294901760
        %1026 = vmatpush1.msra.mxu0 %v1025
        %1027 = vmatprep.subr.mxu0 0.0
        %v1028 = vand.u32 %v340, 4294901760
        %1029 = vmatpush1.msra.mxu0 %v1028
        %1030 = vmatprep.subr.mxu0 0.0
        %v1031 = vand.u32 %v341, 4294901760
        %1032 = vmatpush1.msra.mxu0 %v1031
        %1033 = vmatprep.subr.mxu0 0.0
        %v1034 = vand.u32 %v342, 4294901760
        %1035 = vmatpush1.msra.mxu0 %v1034
        %1036 = vmatprep.subr.mxu0 0.0
        %v1037 = vand.u32 %v343, 4294901760
        %1038 = vmatpush1.msra.mxu0 %v1037
        %1039 = vmatprep.subr.mxu0 0.0
        %v1040 = vand.u32 %v344, 4294901760
        %1041 = vmatpush1.msra.mxu0 %v1040
        %1042 = vmatprep.subr.mxu0 0.0
        %v1043 = vand.u32 %v345, 4294901760
        %1044 = vmatpush1.msra.mxu0 %v1043
        %1045 = vmatprep.subr.mxu0 0.0
        %v1046 = vand.u32 %v346, 4294901760
        %1047 = vmatpush1.msra.mxu0 %v1046
        %1048 = vmatprep.subr.mxu0 0.0
        %v1049 = vand.u32 %v347, 4294901760
        %1050 = vmatpush1.msra.mxu0 %v1049
        %1051 = vmatprep.subr.mxu0 0.0
        %v1052 = vand.u32 %v348, 4294901760
        %1053 = vmatpush1.msra.mxu0 %v1052
        %1054 = vmatprep.subr.mxu0 0.0
        %v1055 = vand.u32 %v349, 4294901760
        %1056 = vmatpush1.msra.mxu0 %v1055
        %1057 = vmatprep.subr.mxu0 0.0
        %v1058 = vand.u32 %v350, 4294901760
        %1059 = vmatpush1.msra.mxu0 %v1058
        %1060 = vmatprep.subr.mxu0 0.0
        %v1061 = vand.u32 %v351, 4294901760
        %1062 = vmatpush1.msra.mxu0 %v1061
        %1063 = vmatprep.subr.mxu0 0.0
        %v1064 = vand.u32 %v352, 4294901760
        %1065 = vmatpush1.msra.mxu0 %v1064
        %1066 = vmatprep.subr.mxu0 0.0
        %v1067 = vand.u32 %v353, 4294901760
        %1068 = vmatpush1.msra.mxu0 %v1067
        %1069 = vmatprep.subr.mxu0 0.0
        %1070 = vmatpush1.msra.mxu0 0.0
        %1071 = vmatprep.subr.mxu0 0.0
        %1072 = vmatpush1.msra.mxu0 0.0
        %1073 = vmatprep.subr.mxu0 0.0
        %1074 = vmatpush1.msra.mxu0 0.0
        %1075 = vmatprep.subr.mxu0 0.0
        %1076 = vmatpush1.msra.mxu0 0.0
        %1077 = vmatprep.subr.mxu0 0.0
        %1078 = vmatpush1.msra.mxu0 0.0
        %1079 = vmatprep.subr.mxu0 0.0
        %1080 = vmatpush1.msra.mxu0 0.0
        %1081 = vmatprep.subr.mxu0 0.0
        %1082 = vmatpush1.msra.mxu0 0.0
        %1083 = vmatprep.subr.mxu0 0.0
        %1084 = vmatpush1.msra.mxu0 0.0
        %1085 = vmatprep.subr.mxu0 0.0
        %1086 = vmatpush1.msra.mxu0 0.0
        %1087 = vmatprep.subr.mxu0 0.0
        %1088 = vmatpush1.msra.mxu0 0.0
        %1089 = vmatprep.subr.mxu0 0.0
        %1090 = vmatpush1.msra.mxu0 0.0
        %1091 = vmatprep.subr.mxu0 0.0
        %1092 = vmatpush1.msra.mxu0 0.0
        %1093 = vmatprep.subr.mxu0 0.0
        %1094 = vmatpush1.msra.mxu0 0.0
        %1095 = vmatprep.subr.mxu0 0.0
        %1096 = vmatpush1.msra.mxu0 0.0
        %1097 = vmatprep.subr.mxu0 0.0
        %1098 = vmatpush1.msra.mxu0 0.0
        %1099 = vmatprep.subr.mxu0 0.0
        %1100 = vmatpush1.msra.mxu0 0.0
        %1101 = vmatprep.mubr.f32.mxu0 0.0
        %v1102 = vand.u32 %v284, 4294901760
        %1103 = vmatmul.mubr.f32.gmra.mrb[0].mxu0 %v1102
        %v1104 = vpop.f32.mrb[0].mxu0
        %v1105 = vadd.f32 %v1000, %v1104
        %v1106 = vpop.f32.mrb[0].mxu0
        %1107 = vmatprep.mubr.f32.mxu0 0.0
        %v1108 = vand.u32 %v293, 4294901760
        %1109 = vmatmul.mubr.f32.gmra.mrb[0].mxu0 %v1108
        %v1110 = vpop.f32.mrb[0].mxu0
        %v1111 = vadd.f32 %v1006, %v1110
        %v1112 = vpop.f32.mrb[0].mxu0
        %1113 = vmatprep.mubr.f32.mxu0 0.0
        %v1114 = vand.u32 %v302, 4294901760
        %1115 = vmatmul.mubr.f32.gmra.mrb[0].mxu0 %v1114
        %v1116 = vpop.f32.mrb[0].mxu0
        %v1117 = vadd.f32 %v1012, %v1116
        %v1118 = vpop.f32.mrb[0].mxu0
        %1119 = vmatprep.mubr.f32.mxu0 0.0
        %v1120 = vand.u32 %v311, 4294901760
        %1121 = vmatmul.mubr.f32.gmra.mrb[0].mxu0 %v1120
        %v1122 = vpop.f32.mrb[0].mxu0
        %v1123 = vadd.f32 %v1018, %v1122
        %v1124 = vpop.f32.mrb[0].mxu0
        %1125 = vdwg.mxu0
        %v1126 = vsub.f32 0.0, %v1105
        %v1127 = vsub.f32 0.0, %v1111
        %v1128 = vsub.f32 0.0, %v1117
        %v1129 = vsub.f32 0.0, %v1123
        %v1130 = vmul.f32 %v1126, 1.442695
        %v1131 = vpow.pop %v1130
        %v1132 = vmul.f32 %v1127, 1.442695
        %v1133 = vpow.pop %v1132
        %v1134 = vmul.f32 %v1128, 1.442695
        %v1135 = vpow.pop %v1134
        %v1136 = vmul.f32 %v1129, 1.442695
        %v1137 = vpow.pop %v1136
        %vm1138 = vcmask 130048
        %1139 = vst.msk [vmem:[%s266] sm:$0xff] %vm1138, %v1131
        %1140 = vst.msk [vmem:[%s266 + $0x8] sm:$0xff] %vm1138, %v1133
        %1141 = vst.msk [vmem:[%s266 + $0x10] sm:$0xff] %vm1138, %v1135
        %1142 = vst.msk [vmem:[%s266 + $0x18] sm:$0xff] %vm1138, %v1137
        %s1143 = sand.u32 %s140, 1
        %s1144 = scalar_lea.sflag [#allocation4], %s1143
        %s1145 = sand.u32 %s140, 1
        %s1146 = smul.addr %s1145, 32
        %s1147 = scalar_lea.vmem [#allocation3], %s1146
        %s1148 = smul.u32 4, %s22
        %p1149 = scmp.lt.s32.totalorder %s1148, 7
        %s1150 = scalar_select %p1149, %s1148, 7
        %s1151 = smul.addr %s1150, 8
        %s1152 = scalar_lea.vmem %s6, %s1151
        // Predicated region
        $region41: #{tpu_custom_call.1} parent=39 // pred_check
          %p1153 = pneg %p150
        $region42: #{tpu_custom_call.1} parent=39 // pred_check_branch
          %1155 = sbr.rel (%p1153) target = $region44
        $region43: #{tpu_custom_call.1} parent=39 // pred_region
          %s1156 = smul.u32 4, %s22
          %s1158 = ssub.s32 512, 512
          %1159 = vsyncadd %s1144, %s1158
          %s1160 = smul.addr %s1156, 128
          %s1161 = scalar_lea.hbm %s5, %s1160
          %s1162 = sshll.u32 %s1147, 4
          %s1163 = int_to_ptr.vmem [resolvable:$true] %s1162
          %1168 = dma.vmem_to_hbm [thread:$0]  %s1163, 512, %s1161, %s1144, 128, 128, 8
        $region44: #{tpu_custom_call.1} parent=39 // pred_fallthru
          _
        // Predicated region
        $region45: #{tpu_custom_call.1} parent=39 // pred_check
          %p1169 = pneg %p176
        $region46: #{tpu_custom_call.1} parent=39 // pred_check_branch
          %1171 = sbr.rel (%p1169) target = $region48
        $region47: #{tpu_custom_call.1} parent=39 // pred_region
          %s1172 = smul.u32 4, %s22
        $region48: #{tpu_custom_call.1} parent=39 // pred_fallthru
          _
      $region40: #{tpu_custom_call.1} parent=5 // pred_fallthru
        _
      %p1173 = scmp.le.s32.totalorder 2, %s17
      // Predicated region
      $region49: #{tpu_custom_call.1} parent=5 // pred_check
        %p1174 = pneg %p1173
      $region50: #{tpu_custom_call.1} parent=5 // pred_check_branch
        %1176 = sbr.rel (%p1174) target = $region52
      $region51: #{tpu_custom_call.1} parent=5 // pred_region
        %s1177 = ssub.s32 %s17, 2
        // Predicated region
        $region53: #{tpu_custom_call.1} parent=51 // pred_check
          %p1178 = pneg %p156
        $region54: #{tpu_custom_call.1} parent=51 // pred_check_branch
          %1180 = sbr.rel (%p1178) target = $region56
        $region55: #{tpu_custom_call.1} parent=51 // pred_region
          %s1181 = sand.u32 %s141, 1
          %s1182 = scalar_lea.sflag [#allocation4], %s1181
          %s1183 = sand.u32 %s141, 1
          %s1184 = smul.addr %s1183, 32
          %s1185 = scalar_lea.vmem [#allocation3], %s1184
          %1186 = dma.done %s1182, 512
        $region56: #{tpu_custom_call.1} parent=51 // pred_fallthru
          _
        // Predicated region
        $region57: #{tpu_custom_call.1} parent=51 // pred_check
          %p1187 = pneg %p182
        $region58: #{tpu_custom_call.1} parent=51 // pred_check_branch
          %1189 = sbr.rel (%p1187) target = $region60
        $region59: #{tpu_custom_call.1} parent=51 // pred_region
          %s1190 = smul.u32 4, %s23
          %p1191 = scmp.lt.s32.totalorder %s1190, 7
          %s1192 = scalar_select %p1191, %s1190, 7
          %s1193 = smul.addr %s1192, 8
          %s1194 = scalar_lea.vmem %s6, %s1193
        $region60: #{tpu_custom_call.1} parent=51 // pred_fallthru
          _
      $region52: #{tpu_custom_call.1} parent=5 // pred_fallthru
        _
    $region6: #{tpu_custom_call.1} parent=1 // loop_footer
      %s21 = sadd.s32 1, %s17
    $region7: #{tpu_custom_call.1} parent=1 // loop_footer_branch
      %16 = sbr.rel target = $region3
    $region8: #{tpu_custom_call.1} parent=1 // loop_exit
      _
    %1195 = vsyncpa [#allocation4], 1
    %s1196 = scalar_lea.sflag [#allocation4], 1
    %1197 = vsyncpa %s1196, 1

</llo_original>
